<compile_context>
chip_gen: v6e
topology: v6e:2x2x1
jax: 0.10.0
libtpu: 0.0.40
codegen_flags: <defaults>
</compile_context>

<pallas_src>
import jax
import jax.numpy as jnp
from jax.experimental import pallas as pl
from jax.experimental.pallas import tpu as pltpu


def _make_fusion_kernel(num_inputs: int, cls_num: int, c_in: int):
    """out = W @ concat_l(x_l) + b over one spatial tile (unrolled VPU MACs).

    Every ref block is (cls_num, R, L): L is the lane axis (128 or HW) and R
    the sublane-packed row axis.  Weight/bias are flat SMEM scalars.
    """

    def kernel(w_ref, b_ref, *refs):
        x_refs = refs[:num_inputs]            # each (cls_num, R, L) VMEM
        o_ref = refs[num_inputs]              # (cls_num, R, L) VMEM
        row_shape = o_ref.shape[1:]           # (R, L)

        # Bias-initialized accumulators, one per output channel.  Live set =
        # cls_num accumulators + 1 input row -> no spill for tiny cls_num.
        accs = [jnp.full(row_shape, b_ref[co], dtype=jnp.float32)
                for co in range(cls_num)]

        # Read each input row exactly once; feed all output channels from it.
        for l in range(num_inputs):
            for ci in range(cls_num):
                row = x_refs[l][ci].astype(jnp.float32)        # (R, L)
                for co in range(cls_num):
                    w = w_ref[co * c_in + l * cls_num + ci]    # SMEM scalar
                    accs[co] = accs[co] + row * w

        for co in range(cls_num):
            o_ref[co] = accs[co].astype(o_ref.dtype)

    return kernel


def deep_supervision_fusion_block_v3(outs, weight, bias, *,
                                     target_step_bytes=4 * 1024 * 1024,
                                     vmem_budget_bytes=32 * 1024 * 1024):
    """Fused torch.cat(outs, dim=1) + Conv2d(C_in, cls_num, kernel_size=1).

    outs:   list of (N, cls_num, H, W) arrays (NCHW, all same shape)
    weight: (cls_num, len(outs)*cls_num, 1, 1)
    bias:   (cls_num,)
    """
    num_inputs = len(outs)
    N, cls_num, H, W = outs[0].shape
    c_in = num_inputs * cls_num
    assert weight.shape[:2] == (cls_num, c_in)
    HW = H * W
    dtype = outs[0].dtype
    itemsize = jnp.dtype(dtype).itemsize

    # ---- Tile sizing: >= target_step_bytes of HBM traffic per grid step,
    # capped so double-buffered blocks + f32 intermediates fit a v7x-safe
    # VMEM budget. ----
    per_elem_hbm = (num_inputs + 1) * cls_num * itemsize
    per_elem_vmem = 2 * per_elem_hbm + (cls_num + 2) * 4      # dbl-buf I/O + f32 scratch
    tile_elems = max(128, target_step_bytes // per_elem_hbm)
    tile_cap = max(128, (vmem_budget_bytes - 4 * 1024 * 1024) // per_elem_vmem)
    tile_elems = min(tile_elems, tile_cap)

    packed = (HW % 128 == 0)
    if packed:
        # Free re-view of contiguous NCHW: (N, C, HW//128, 128) -> fully packed
        # (sublane, lane) vregs and dense unmasked stores.
        rows_total = HW // 128
        sub = 8 if itemsize >= 4 else 32 // itemsize           # 8 f32 / 16 bf16
        r_blk = max(sub, (tile_elems // 128) // sub * sub)
        if r_blk >= rows_total:
            r_blk = rows_total                                 # full-extent block
        view_shape = (N, cls_num, rows_total, 128)
        block_shape = (None, cls_num, r_blk, 128)
        index_map = lambda s, n: (n, 0, s, 0)
        grid_s = pl.cdiv(rows_total, r_blk)
        blk_elems = r_blk * 128
    else:
        # Ragged spatial extent: flat lane layout, 128-multiple tiles with a
        # masked tail (or a single full-extent block if it fits one tile).
        if tile_elems >= HW:
            t_hw = HW
        else:
            t_hw = max(128, (tile_elems // 128) * 128)
        view_shape = (N, cls_num, 1, HW)
        block_shape = (None, cls_num, 1, t_hw)
        index_map = lambda s, n: (n, 0, 0, s)
        grid_s = pl.cdiv(HW, t_hw)
        blk_elems = t_hw

    xs = [x.reshape(view_shape) for x in outs]                 # free reshapes
    w1d = weight.reshape(cls_num * c_in).astype(jnp.float32)   # flat 1D SMEM
    b1d = bias.reshape(cls_num).astype(jnp.float32)

    data_spec = pl.BlockSpec(block_shape, index_map)
    smem_spec = pl.BlockSpec(memory_space=pltpu.MemorySpace.SMEM)

    # VMEM limit derived from actual block sizes (+ headroom); never below the
    # default scoped limit, comfortably under v7x's 64 MiB physical VMEM.
    vmem_needed = (2 * (num_inputs + 1) * cls_num * blk_elems * itemsize
                   + (cls_num + 2) * blk_elems * 4
                   + 4 * 1024 * 1024)
    vmem_limit = int(min(100 * 1024 * 1024, max(32 * 1024 * 1024, vmem_needed)))

    cost = pl.CostEstimate(
        flops=2 * N * HW * cls_num * c_in,
        transcendentals=0,
        bytes_accessed=(num_inputs + 1) * N * cls_num * HW * itemsize
        + (w1d.size + b1d.size) * 4,
    )

    out = pl.pallas_call(
        _make_fusion_kernel(num_inputs, cls_num, c_in),
        out_shape=jax.ShapeDtypeStruct(view_shape, dtype),
        grid=(grid_s, N),   # larger parallel axis first (v7x megacore)
        in_specs=[smem_spec, smem_spec] + [data_spec] * num_inputs,
        out_specs=data_spec,
        compiler_params=pltpu.CompilerParams(
            dimension_semantics=("parallel", "parallel"),
            vmem_limit_bytes=vmem_limit,
        ),
        cost_estimate=cost,
    )(w1d, b1d, *xs)

    return out.reshape(N, cls_num, H, W)


if __name__ == "__main__":
    root = jax.random.PRNGKey(0)

    def run_case(key, N, cls_num, num_layers, H, W, **kw):
        n_in = num_layers + 1
        c_in = n_in * cls_num
        keys = jax.random.split(key, n_in + 2)
        outs = [jax.random.normal(keys[i], (N, cls_num, H, W), dtype=jnp.float32)
                for i in range(n_in)]
        # Same shapes as nn.Conv2d((num_layers+1)*cls_num, cls_num, 1).
        weight = jax.random.normal(keys[n_in], (cls_num, c_in, 1, 1),
                                   dtype=jnp.float32) * 0.1
        bias = jax.random.normal(keys[n_in + 1], (cls_num,), dtype=jnp.float32) * 0.1

        y = deep_supervision_fusion_block_v3(outs, weight, bias, **kw)
        jax.block_until_ready(y)

        # Reference: concat along channels then 1x1 conv (same math as PyTorch).
        x_cat = jnp.concatenate(outs, axis=1)
        y_ref = (jnp.einsum("nchw,oc->nohw", x_cat, weight.reshape(cls_num, c_in))
                 + bias[None, :, None, None])
        assert y.shape == (N, cls_num, H, W)
        assert jnp.allclose(y, y_ref, atol=1e-5, rtol=1e-5), (
            float(jnp.max(jnp.abs(y - y_ref))))

    k1, k2, k3, k4, k5 = jax.random.split(root, 5)
    # Default module config: cls_num=1, num_layers=4 -> Conv2d(5, 1, 1); packed path.
    run_case(k1, N=2, cls_num=1, num_layers=4, H=16, W=16)
    # Multi-class variant: channel mixing inside the kernel; packed path.
    run_case(k2, N=2, cls_num=3, num_layers=4, H=16, W=16)
    # Packed path with multiple row-tiles and a masked tail (forced small tiles).
    run_case(k3, N=2, cls_num=1, num_layers=4, H=40, W=48,
             target_step_bytes=24 * 1024)
    # Ragged spatial extent (HW=400): flat fallback, single full-extent block.
    run_case(k4, N=2, cls_num=1, num_layers=4, H=20, W=20)
    # Ragged spatial extent, tiled 128-wide with masked tail.
    run_case(k5, N=2, cls_num=3, num_layers=4, H=20, W=20,
             target_step_bytes=8 * 1024)

    print("KERNEL_OK")
</pallas_src>

<mosaic_0001>
module attributes {stable_mosaic.version = 11 : i64} {
  func.func @kernel(%arg0: i32, %arg1: i32, %arg2: memref<5xf32, #tpu.memory_space<smem>>, %arg3: memref<1xf32, #tpu.memory_space<smem>>, %arg4: memref<1x1x2x128xf32, #tpu.memory_space<vmem>>, %arg5: memref<1x1x2x128xf32, #tpu.memory_space<vmem>>, %arg6: memref<1x1x2x128xf32, #tpu.memory_space<vmem>>, %arg7: memref<1x1x2x128xf32, #tpu.memory_space<vmem>>, %arg8: memref<1x1x2x128xf32, #tpu.memory_space<vmem>>, %arg9: memref<1x1x2x128xf32, #tpu.memory_space<vmem>>) attributes {dimension_semantics = [#tpu.dimension_semantics<parallel>, #tpu.dimension_semantics<parallel>], iteration_bounds = array<i64: 1, 2>, scalar_prefetch = 0 : i64, scratch_operands = 0 : i64, tpu.core_type = #tpu.core_type<tc>, window_params = [{transform_indices = @transform_0, window_bounds = array<i64: 5>}, {transform_indices = @transform_1, window_bounds = array<i64: 1>}, {transform_indices = @transform_2, window_bounds = array<i64: 1, 1, 2, 128>}, {transform_indices = @transform_3, window_bounds = array<i64: 1, 1, 2, 128>}, {transform_indices = @transform_4, window_bounds = array<i64: 1, 1, 2, 128>}, {transform_indices = @transform_5, window_bounds = array<i64: 1, 1, 2, 128>}, {transform_indices = @transform_6, window_bounds = array<i64: 1, 1, 2, 128>}, {transform_indices = @transform_7, window_bounds = array<i64: 1, 1, 2, 128>}]} {
    %c0 = arith.constant 0 : index
    %0 = memref.load %arg3[%c0] : memref<1xf32, #tpu.memory_space<smem>>
    %1 = vector.broadcast %0 : f32 to vector<2x128xf32>
    %c0_0 = arith.constant 0 : index
    %c0_1 = arith.constant 0 : index
    %c0_2 = arith.constant 0 : index
    %c0_3 = arith.constant 0 : index
    %2 = vector.load %arg4[%c0_0, %c0_1, %c0_2, %c0_3] : memref<1x1x2x128xf32, #tpu.memory_space<vmem>>, vector<1x1x2x128xf32>
    %3 = vector.shape_cast %2 : vector<1x1x2x128xf32> to vector<2x128xf32>
    %c0_4 = arith.constant 0 : index
    %4 = memref.load %arg2[%c0_4] : memref<5xf32, #tpu.memory_space<smem>>
    %5 = vector.broadcast %4 : f32 to vector<2x128xf32>
    %6 = arith.mulf %3, %5 : vector<2x128xf32>
    %7 = arith.addf %1, %6 : vector<2x128xf32>
    %c0_5 = arith.constant 0 : index
    %c0_6 = arith.constant 0 : index
    %c0_7 = arith.constant 0 : index
    %c0_8 = arith.constant 0 : index
    %8 = vector.load %arg5[%c0_5, %c0_6, %c0_7, %c0_8] : memref<1x1x2x128xf32, #tpu.memory_space<vmem>>, vector<1x1x2x128xf32>
    %9 = vector.shape_cast %8 : vector<1x1x2x128xf32> to vector<2x128xf32>
    %c1 = arith.constant 1 : index
    %10 = memref.load %arg2[%c1] : memref<5xf32, #tpu.memory_space<smem>>
    %11 = vector.broadcast %10 : f32 to vector<2x128xf32>
    %12 = arith.mulf %9, %11 : vector<2x128xf32>
    %13 = arith.addf %7, %12 : vector<2x128xf32>
    %c0_9 = arith.constant 0 : index
    %c0_10 = arith.constant 0 : index
    %c0_11 = arith.constant 0 : index
    %c0_12 = arith.constant 0 : index
    %14 = vector.load %arg6[%c0_9, %c0_10, %c0_11, %c0_12] : memref<1x1x2x128xf32, #tpu.memory_space<vmem>>, vector<1x1x2x128xf32>
    %15 = vector.shape_cast %14 : vector<1x1x2x128xf32> to vector<2x128xf32>
    %c2 = arith.constant 2 : index
    %16 = memref.load %arg2[%c2] : memref<5xf32, #tpu.memory_space<smem>>
    %17 = vector.broadcast %16 : f32 to vector<2x128xf32>
    %18 = arith.mulf %15, %17 : vector<2x128xf32>
    %19 = arith.addf %13, %18 : vector<2x128xf32>
    %c0_13 = arith.constant 0 : index
    %c0_14 = arith.constant 0 : index
    %c0_15 = arith.constant 0 : index
    %c0_16 = arith.constant 0 : index
    %20 = vector.load %arg7[%c0_13, %c0_14, %c0_15, %c0_16] : memref<1x1x2x128xf32, #tpu.memory_space<vmem>>, vector<1x1x2x128xf32>
    %21 = vector.shape_cast %20 : vector<1x1x2x128xf32> to vector<2x128xf32>
    %c3 = arith.constant 3 : index
    %22 = memref.load %arg2[%c3] : memref<5xf32, #tpu.memory_space<smem>>
    %23 = vector.broadcast %22 : f32 to vector<2x128xf32>
    %24 = arith.mulf %21, %23 : vector<2x128xf32>
    %25 = arith.addf %19, %24 : vector<2x128xf32>
    %c0_17 = arith.constant 0 : index
    %c0_18 = arith.constant 0 : index
    %c0_19 = arith.constant 0 : index
    %c0_20 = arith.constant 0 : index
    %26 = vector.load %arg8[%c0_17, %c0_18, %c0_19, %c0_20] : memref<1x1x2x128xf32, #tpu.memory_space<vmem>>, vector<1x1x2x128xf32>
    %27 = vector.shape_cast %26 : vector<1x1x2x128xf32> to vector<2x128xf32>
    %c4 = arith.constant 4 : index
    %28 = memref.load %arg2[%c4] : memref<5xf32, #tpu.memory_space<smem>>
    %29 = vector.broadcast %28 : f32 to vector<2x128xf32>
    %30 = arith.mulf %27, %29 : vector<2x128xf32>
    %31 = arith.addf %25, %30 : vector<2x128xf32>
    %c0_21 = arith.constant 0 : index
    %c0_22 = arith.constant 0 : index
    %c0_23 = arith.constant 0 : index
    %c0_24 = arith.constant 0 : index
    %32 = vector.load %arg9[%c0_21, %c0_22, %c0_23, %c0_24] : memref<1x1x2x128xf32, #tpu.memory_space<vmem>>, vector<1x1x2x128xf32>
    %33 = vector.shape_cast %32 : vector<1x1x2x128xf32> to vector<2x128xf32>
    %34 = vector.shape_cast %31 : vector<2x128xf32> to vector<1x1x2x128xf32>
    tpu.vector_store %arg9[%c0_21, %c0_22, %c0_23, %c0_24], %34 {strides = array<i32>} : memref<1x1x2x128xf32, #tpu.memory_space<vmem>>, vector<1x1x2x128xf32>,
    return
  }
  func.func @transform_0(%arg0: i32, %arg1: i32) -> i32 {
    %c0_i32 = arith.constant 0 : i32
    %c0_i32_0 = arith.constant 0 : i32
    return %c0_i32 : i32
  }
  func.func @transform_1(%arg0: i32, %arg1: i32) -> i32 {
    %c0_i32 = arith.constant 0 : i32
    %c0_i32_0 = arith.constant 0 : i32
    return %c0_i32 : i32
  }
  func.func @transform_2(%arg0: i32, %arg1: i32) -> (i32, i32, i32, i32) {
    %c0_i32 = arith.constant 0 : i32
    %c0_i32_0 = arith.constant 0 : i32
    %c0_i32_1 = arith.constant 0 : i32
    return %arg1, %c0_i32, %arg0, %c0_i32_0 : i32, i32, i32, i32
  }
  func.func @transform_3(%arg0: i32, %arg1: i32) -> (i32, i32, i32, i32) {
    %c0_i32 = arith.constant 0 : i32
    %c0_i32_0 = arith.constant 0 : i32
    %c0_i32_1 = arith.constant 0 : i32
    return %arg1, %c0_i32, %arg0, %c0_i32_0 : i32, i32, i32, i32
  }
  func.func @transform_4(%arg0: i32, %arg1: i32) -> (i32, i32, i32, i32) {
    %c0_i32 = arith.constant 0 : i32
    %c0_i32_0 = arith.constant 0 : i32
    %c0_i32_1 = arith.constant 0 : i32
    return %arg1, %c0_i32, %arg0, %c0_i32_0 : i32, i32, i32, i32
  }
  func.func @transform_5(%arg0: i32, %arg1: i32) -> (i32, i32, i32, i32) {
    %c0_i32 = arith.constant 0 : i32
    %c0_i32_0 = arith.constant 0 : i32
    %c0_i32_1 = arith.constant 0 : i32
    return %arg1, %c0_i32, %arg0, %c0_i32_0 : i32, i32, i32, i32
  }
  func.func @transform_6(%arg0: i32, %arg1: i32) -> (i32, i32, i32, i32) {
    %c0_i32 = arith.constant 0 : i32
    %c0_i32_0 = arith.constant 0 : i32
    %c0_i32_1 = arith.constant 0 : i32
    return %arg1, %c0_i32, %arg0, %c0_i32_0 : i32, i32, i32, i32
  }
  func.func @transform_7(%arg0: i32, %arg1: i32) -> (i32, i32, i32, i32) {
    %c0_i32 = arith.constant 0 : i32
    %c0_i32_0 = arith.constant 0 : i32
    %c0_i32_1 = arith.constant 0 : i32
    return %arg1, %c0_i32, %arg0, %c0_i32_0 : i32, i32, i32, i32
  }
}

</mosaic_0001>

<llo_original>
// kernel: tpu_custom_call.1
$region0: #{tpu_custom_call.1}
  #allocation0 [shape = 'u32[]', space=smem, size = 0x4, offset = 0x4, fixed_abs, tag = 'smem constant byte address 0x4 - core index']
  #allocation1 [shape = 'u32[144,128]{1,0:T(1,128)}', space=vmem, size = 0x12000, scoped, tag = 'internal scratch']
  #allocation2 [shape = 'f32[1]{0:T(128)S(6)}', space=smem, size = 0x200, scoped, tag = 'scoped memory for tpu_custom_call.1']
  %s0 = inlined_call_operand.vmem [shape: f32[5], index: 0, kind: input, shape index: {}]
  %s1 = inlined_call_operand.<no memory space> [shape: f32[1], index: 1, kind: input, shape index: {}]
  %s2 = inlined_call_operand.hbm [shape: f32[2,1,2,128], index: 2, kind: input, shape index: {}]
  %s3 = inlined_call_operand.vmem [shape: f32[2,1,2,128], index: 3, kind: input, shape index: {}]
  %s4 = inlined_call_operand.hbm [shape: f32[2,1,2,128], index: 4, kind: input, shape index: {}]
  %s5 = inlined_call_operand.vmem [shape: f32[2,1,2,128], index: 5, kind: input, shape index: {}]
  %s6 = inlined_call_operand.hbm [shape: f32[2,1,2,128], index: 6, kind: input, shape index: {}]
  %s7 = inlined_call_operand.hbm [shape: f32[2,1,2,128], index: 7, kind: output, shape index: {}]
  %s8 = sld [smem:[#allocation0]]
  $region77: #{tpu_custom_call.1} parent=0
    _
  %s10 = ssub.s32 1, %s8
  %s11 = scalar_select 0, %s10, %s8
  %12 = sst [smem:[#allocation2]] %s1
  $region1: #{tpu_custom_call.1} parent=0
    #allocation3 [shape = 'u8[512]{0}', space=smem, size = 0x200, scoped, tag = 'input window, operand 0, single buffered']
    #allocation4 [shape = 's32[2]{0}', space=sflag, size = 0x8, scoped, tag = 'scoped memory for tpu_custom_call.1']
    #allocation5 [shape = 's32[2]{0}', space=sflag, size = 0x8, scoped, tag = 'scoped memory for tpu_custom_call.1']
    #allocation6 [shape = 's32[2]{0}', space=sflag, size = 0x8, scoped, tag = 'scoped memory for tpu_custom_call.1']
    #allocation7 [shape = 'u8[2048]{0}', space=vmem, size = 0x800, scoped, tag = 'input window, operand 2']
    #allocation8 [shape = 'u8[2048]{0}', space=vmem, size = 0x800, scoped, tag = 'input window, operand 4']
    #allocation9 [shape = 's32[2]{0}', space=sflag, size = 0x8, scoped, tag = 'scoped memory for tpu_custom_call.1']
    #allocation10 [shape = 'u8[2048]{0}', space=vmem, size = 0x800, scoped, tag = 'input window, operand 6']
    #allocation11 [shape = 'u8[2048]{0}', space=vmem, size = 0x800, scoped, tag = 'output window, operand 0']
    %13 = vsyncpa [#allocation6], 0
    %14 = vsyncpa [#allocation4], 0
    %s15 = scalar_lea.sflag [#allocation4], 1
    %16 = vsyncpa %s15, 0
    %17 = vsyncpa [#allocation9], 0
    %s18 = scalar_lea.sflag [#allocation9], 1
    %19 = vsyncpa %s18, 0
    %20 = vsyncpa [#allocation5], 0
    %s21 = scalar_lea.sflag [#allocation5], 1
    %22 = vsyncpa %s21, 0
    loop: start=0, step=1, limit=4
    $region2: #{tpu_custom_call.1} parent=1 // loop_pre_header
      _
    $region3: #{tpu_custom_call.1} parent=1 // loop_header
      %s24 = sphi 0, %s28
      %p25 = scmp.ge.s32.totalorder %s24, 4
      %s31 = sphi 0, %s43
      %s32 = sphi 0, %s39
      %s33 = sphi 0, %s31
      %s34 = sphi 0, %s32
      %s35 = sphi 0, %s33
      %s36 = sphi 0, %s34
      %s44 = sphi 0, %s44
      %s46 = sphi 0, %s44
      %s47 = sphi 0, %s46
      %s61 = sphi 0, %s47
      %s65 = sphi 0, %s65
      %s67 = sphi 0, %s65
      %s68 = sphi 0, %s67
      %s82 = sphi 0, %s68
      %s90 = sphi 0, %s92
      %s93 = sphi 0, %s90
      %s94 = sphi 0, %s93
      %s110 = sphi 0, %s94
      %s118 = sphi 0, %s120
      %s121 = sphi 0, %s118
      %s122 = sphi 0, %s121
      %s138 = sphi 0, %s122
      %s146 = sphi 0, %s148
      %s149 = sphi 0, %s146
      %s150 = sphi 0, %s149
      %s166 = sphi 0, %s150
      %s174 = sphi 0, %s176
      %s177 = sphi 0, %s174
      %s178 = sphi 0, %s177
      %s194 = sphi 0, %s178
      %s202 = sphi 0, %s204
      %s205 = sphi 0, %s202
      %s206 = sphi 0, %s205
      %s222 = sphi 0, %s206
      %s230 = sphi 0, %s232
      %s233 = sphi 0, %s230
      %s234 = sphi 0, %s233
      %s250 = sphi 0, %s234
    $region4: #{tpu_custom_call.1} parent=1 // loop_header_branch
      %27 = sbr.rel (%p25) target = $region8
    $region5: #{tpu_custom_call.1} parent=1 // loop_body
      %s29 = ssub.s32 %s24, 1
      %s30 = ssub.s32 %s24, 2
      %s37 = sadd.s32 1, %s32
      %p38 = scmp.ge.s32.totalorder %s37, 2
      %s39 = scalar_select %p38, 0, %s37
      %s40 = sadd.s32 1, %s31
      %s41 = scalar_select %p38, %s40, %s31
      %p42 = scmp.ge.s32.totalorder %s41, 1
      %s43 = scalar_select %p42, 0, %s41
      %s45 = sadd.s32 %s44, 1
      %p48 = scmp.eq.s32.totalorder %s24, 1
      %p49 = scmp.ne.s32.totalorder %s44, %s46
      %p50 = scmp.eq.s32.totalorder %s24, 0
      %p51 = por %p49, %p50
      %p52 = scmp.ne.s32.totalorder %s44, %s46
      %p53 = scmp.eq.s32.totalorder %s29, 1
      %p54 = por %p52, %p53
      %p55 = scmp.ne.s32.totalorder %s46, %s47
      %p56 = scmp.eq.s32.totalorder %s29, 0
      %p57 = por %p55, %p56
      %p58 = scmp.ne.s32.totalorder %s46, %s47
      %p59 = scmp.eq.s32.totalorder %s30, 1
      %p60 = por %p58, %p59
      %p62 = scmp.ne.s32.totalorder %s47, %s61
      %p63 = scmp.eq.s32.totalorder %s30, 0
      %p64 = por %p62, %p63
      %s66 = sadd.s32 %s65, 1
      %p69 = scmp.eq.s32.totalorder %s24, 1
      %p70 = scmp.ne.s32.totalorder %s65, %s67
      %p71 = scmp.eq.s32.totalorder %s24, 0
      %p72 = por %p70, %p71
      %p73 = scmp.ne.s32.totalorder %s65, %s67
      %p74 = scmp.eq.s32.totalorder %s29, 1
      %p75 = por %p73, %p74
      %p76 = scmp.ne.s32.totalorder %s67, %s68
      %p77 = scmp.eq.s32.totalorder %s29, 0
      %p78 = por %p76, %p77
      %p79 = scmp.ne.s32.totalorder %s67, %s68
      %p80 = scmp.eq.s32.totalorder %s30, 1
      %p81 = por %p79, %p80
      %p83 = scmp.ne.s32.totalorder %s68, %s82
      %p84 = scmp.eq.s32.totalorder %s30, 0
      %p85 = por %p83, %p84
      %s86 = ssub.s32 %s32, %s39
      %s87 = ssub.s32 %s31, %s43
      %s88 = sor.u32 %s86, %s87
      %p89 = scmp.eq.s32.totalorder %s88, 0
      %s91 = sadd.s32 %s90, 1
      %s92 = scalar_select %p89, %s90, %s91
      %p95 = pneg %p89
      %p96 = scmp.eq.s32.totalorder %s24, 1
      %p97 = por %p95, %p96
      %p98 = scmp.ne.s32.totalorder %s90, %s93
      %p99 = scmp.eq.s32.totalorder %s24, 0
      %p100 = por %p98, %p99
      %p101 = scmp.ne.s32.totalorder %s90, %s93
      %p102 = scmp.eq.s32.totalorder %s29, 1
      %p103 = por %p101, %p102
      %p104 = scmp.ne.s32.totalorder %s93, %s94
      %p105 = scmp.eq.s32.totalorder %s29, 0
      %p106 = por %p104, %p105
      %p107 = scmp.ne.s32.totalorder %s93, %s94
      %p108 = scmp.eq.s32.totalorder %s30, 1
      %p109 = por %p107, %p108
      %p111 = scmp.ne.s32.totalorder %s94, %s110
      %p112 = scmp.eq.s32.totalorder %s30, 0
      %p113 = por %p111, %p112
      %s114 = ssub.s32 %s32, %s39
      %s115 = ssub.s32 %s31, %s43
      %s116 = sor.u32 %s114, %s115
      %p117 = scmp.eq.s32.totalorder %s116, 0
      %s119 = sadd.s32 %s118, 1
      %s120 = scalar_select %p117, %s118, %s119
      %p123 = pneg %p117
      %p124 = scmp.eq.s32.totalorder %s24, 1
      %p125 = por %p123, %p124
      %p126 = scmp.ne.s32.totalorder %s118, %s121
      %p127 = scmp.eq.s32.totalorder %s24, 0
      %p128 = por %p126, %p127
      %p129 = scmp.ne.s32.totalorder %s118, %s121
      %p130 = scmp.eq.s32.totalorder %s29, 1
      %p131 = por %p129, %p130
      %p132 = scmp.ne.s32.totalorder %s121, %s122
      %p133 = scmp.eq.s32.totalorder %s29, 0
      %p134 = por %p132, %p133
      %p135 = scmp.ne.s32.totalorder %s121, %s122
      %p136 = scmp.eq.s32.totalorder %s30, 1
      %p137 = por %p135, %p136
      %p139 = scmp.ne.s32.totalorder %s122, %s138
      %p140 = scmp.eq.s32.totalorder %s30, 0
      %p141 = por %p139, %p140
      %s142 = ssub.s32 %s32, %s39
      %s143 = ssub.s32 %s31, %s43
      %s144 = sor.u32 %s142, %s143
      %p145 = scmp.eq.s32.totalorder %s144, 0
      %s147 = sadd.s32 %s146, 1
      %s148 = scalar_select %p145, %s146, %s147
      %p151 = pneg %p145
      %p152 = scmp.eq.s32.totalorder %s24, 1
      %p153 = por %p151, %p152
      %p154 = scmp.ne.s32.totalorder %s146, %s149
      %p155 = scmp.eq.s32.totalorder %s24, 0
      %p156 = por %p154, %p155
      %p157 = scmp.ne.s32.totalorder %s146, %s149
      %p158 = scmp.eq.s32.totalorder %s29, 1
      %p159 = por %p157, %p158
      %p160 = scmp.ne.s32.totalorder %s149, %s150
      %p161 = scmp.eq.s32.totalorder %s29, 0
      %p162 = por %p160, %p161
      %p163 = scmp.ne.s32.totalorder %s149, %s150
      %p164 = scmp.eq.s32.totalorder %s30, 1
      %p165 = por %p163, %p164
      %p167 = scmp.ne.s32.totalorder %s150, %s166
      %p168 = scmp.eq.s32.totalorder %s30, 0
      %p169 = por %p167, %p168
      %s170 = ssub.s32 %s32, %s39
      %s171 = ssub.s32 %s31, %s43
      %s172 = sor.u32 %s170, %s171
      %p173 = scmp.eq.s32.totalorder %s172, 0
      %s175 = sadd.s32 %s174, 1
      %s176 = scalar_select %p173, %s174, %s175
      %p179 = pneg %p173
      %p180 = scmp.eq.s32.totalorder %s24, 1
      %p181 = por %p179, %p180
      %p182 = scmp.ne.s32.totalorder %s174, %s177
      %p183 = scmp.eq.s32.totalorder %s24, 0
      %p184 = por %p182, %p183
      %p185 = scmp.ne.s32.totalorder %s174, %s177
      %p186 = scmp.eq.s32.totalorder %s29, 1
      %p187 = por %p185, %p186
      %p188 = scmp.ne.s32.totalorder %s177, %s178
      %p189 = scmp.eq.s32.totalorder %s29, 0
      %p190 = por %p188, %p189
      %p191 = scmp.ne.s32.totalorder %s177, %s178
      %p192 = scmp.eq.s32.totalorder %s30, 1
      %p193 = por %p191, %p192
      %p195 = scmp.ne.s32.totalorder %s178, %s194
      %p196 = scmp.eq.s32.totalorder %s30, 0
      %p197 = por %p195, %p196
      %s198 = ssub.s32 %s32, %s39
      %s199 = ssub.s32 %s31, %s43
      %s200 = sor.u32 %s198, %s199
      %p201 = scmp.eq.s32.totalorder %s200, 0
      %s203 = sadd.s32 %s202, 1
      %s204 = scalar_select %p201, %s202, %s203
      %p207 = pneg %p201
      %p208 = scmp.eq.s32.totalorder %s24, 1
      %p209 = por %p207, %p208
      %p210 = scmp.ne.s32.totalorder %s202, %s205
      %p211 = scmp.eq.s32.totalorder %s24, 0
      %p212 = por %p210, %p211
      %p213 = scmp.ne.s32.totalorder %s202, %s205
      %p214 = scmp.eq.s32.totalorder %s29, 1
      %p215 = por %p213, %p214
      %p216 = scmp.ne.s32.totalorder %s205, %s206
      %p217 = scmp.eq.s32.totalorder %s29, 0
      %p218 = por %p216, %p217
      %p219 = scmp.ne.s32.totalorder %s205, %s206
      %p220 = scmp.eq.s32.totalorder %s30, 1
      %p221 = por %p219, %p220
      %p223 = scmp.ne.s32.totalorder %s206, %s222
      %p224 = scmp.eq.s32.totalorder %s30, 0
      %p225 = por %p223, %p224
      %s226 = ssub.s32 %s32, %s39
      %s227 = ssub.s32 %s31, %s43
      %s228 = sor.u32 %s226, %s227
      %p229 = scmp.eq.s32.totalorder %s228, 0
      %s231 = sadd.s32 %s230, 1
      %s232 = scalar_select %p229, %s230, %s231
      %p235 = pneg %p229
      %p236 = scmp.eq.s32.totalorder %s24, 1
      %p237 = por %p235, %p236
      %p238 = scmp.ne.s32.totalorder %s230, %s233
      %p239 = scmp.eq.s32.totalorder %s24, 0
      %p240 = por %p238, %p239
      %p241 = scmp.ne.s32.totalorder %s230, %s233
      %p242 = scmp.eq.s32.totalorder %s29, 1
      %p243 = por %p241, %p242
      %p244 = scmp.ne.s32.totalorder %s233, %s234
      %p245 = scmp.eq.s32.totalorder %s29, 0
      %p246 = por %p244, %p245
      %p247 = scmp.ne.s32.totalorder %s233, %s234
      %p248 = scmp.eq.s32.totalorder %s30, 1
      %p249 = por %p247, %p248
      %p251 = scmp.ne.s32.totalorder %s234, %s250
      %p252 = scmp.eq.s32.totalorder %s30, 0
      %p253 = por %p251, %p252
      %p254 = scmp.le.s32.totalorder 1, %s24
      %p255 = scmp.lt.s32.totalorder %s24, 3
      %p256 = pnand %p254, %p255
      %p257 = pneg %p256
      // Predicated region
      $region9: #{tpu_custom_call.1} parent=5 // pred_check
        _
      $region10: #{tpu_custom_call.1} parent=5 // pred_check_branch
        %259 = sbr.rel (%p256) target = $region12
      $region11: #{tpu_custom_call.1} parent=5 // pred_region
        %s260 = ssub.s32 %s24, 1
        // Predicated region
        $region13: #{tpu_custom_call.1} parent=11 // pred_check
          %p261 = pneg %p57
        $region14: #{tpu_custom_call.1} parent=11 // pred_check_branch
          %263 = sbr.rel (%p261) target = $region16
        $region15: #{tpu_custom_call.1} parent=11 // pred_region
          %s265 = ssub.s32 16, 16
          %266 = vsyncadd [#allocation6], %s265
          %s268 = sshll.u32 %s0, 4
          %s269 = int_to_ptr.vmem [resolvable:$true] %s268
          %271 = dma.vmem_to_smem %s269, 16, [#allocation3], [#allocation6]
        $region16: #{tpu_custom_call.1} parent=11 // pred_fallthru
          _
        // Predicated region
        $region17: #{tpu_custom_call.1} parent=11 // pred_check
          %p272 = pneg %p78
        $region18: #{tpu_custom_call.1} parent=11 // pred_check_branch
          %274 = sbr.rel (%p272) target = $region20
        $region19: #{tpu_custom_call.1} parent=11 // pred_region
          _
        $region20: #{tpu_custom_call.1} parent=11 // pred_fallthru
          _
      $region12: #{tpu_custom_call.1} parent=5 // pred_fallthru
        _
      %p275 = scmp.lt.s32.totalorder %s24, 2
      // Predicated region
      $region21: #{tpu_custom_call.1} parent=5 // pred_check
        %p276 = pneg %p275
      $region22: #{tpu_custom_call.1} parent=5 // pred_check_branch
        %278 = sbr.rel (%p276) target = $region24
      $region23: #{tpu_custom_call.1} parent=5 // pred_region
        // Predicated region
        $region25: #{tpu_custom_call.1} parent=23 // pred_check
          %p279 = pneg %p100
        $region26: #{tpu_custom_call.1} parent=23 // pred_check_branch
          %281 = sbr.rel (%p279) target = $region28
        $region27: #{tpu_custom_call.1} parent=23 // pred_region
          %s282 = sand.u32 %s90, 1
          %s283 = scalar_lea.sflag [#allocation4], %s282
          %s284 = sand.u32 %s90, 1
          %s285 = smul.addr %s284, 2
          %s286 = scalar_lea.vmem [#allocation7], %s285
          %s288 = ssub.s32 32, 32
          %289 = vsyncadd %s283, %s288
          %s290 = sadd.s32 %s31, %s32
          %s291 = smul.addr %s290, 32
          %s292 = scalar_lea.hbm %s2, %s291
          %s294 = sshll.u32 %s286, 4
          %s295 = int_to_ptr.vmem [resolvable:$true] %s294
          %297 = dma.hbm_to_vmem [thread:$0]  %s292, 32, %s295, %s283
        $region28: #{tpu_custom_call.1} parent=23 // pred_fallthru
          _
        // Predicated region
        $region29: #{tpu_custom_call.1} parent=23 // pred_check
          %p298 = pneg %p128
        $region30: #{tpu_custom_call.1} parent=23 // pred_check_branch
          %300 = sbr.rel (%p298) target = $region32
        $region31: #{tpu_custom_call.1} parent=23 // pred_region
          %p301 = scmp.lt.s32.totalorder %s32, 1
          %s302 = scalar_select %p301, %s32, 1
          %p303 = scmp.lt.s32.totalorder %s31, 0
          %s304 = scalar_select %p303, %s31, 0
          %s305 = sadd.s32 %s304, %s302
          %s306 = smul.addr %s305, 2
          %s307 = scalar_lea.vmem %s3, %s306
        $region32: #{tpu_custom_call.1} parent=23 // pred_fallthru
          _
        // Predicated region
        $region33: #{tpu_custom_call.1} parent=23 // pred_check
          %p308 = pneg %p156
        $region34: #{tpu_custom_call.1} parent=23 // pred_check_branch
          %310 = sbr.rel (%p308) target = $region36
        $region35: #{tpu_custom_call.1} parent=23 // pred_region
          %s311 = sand.u32 %s24, 1
          %s312 = scalar_lea.sflag [#allocation9], %s311
          %s313 = sand.u32 %s146, 1
          %s314 = smul.addr %s313, 2
          %s315 = scalar_lea.vmem [#allocation8], %s314
          %s317 = ssub.s32 32, 32
          %318 = vsyncadd %s312, %s317
          %s319 = sadd.s32 %s31, %s32
          %s320 = smul.addr %s319, 32
          %s321 = scalar_lea.hbm %s4, %s320
          %s323 = sshll.u32 %s315, 4
          %s324 = int_to_ptr.vmem [resolvable:$true] %s323
          %326 = dma.hbm_to_vmem [thread:$0]  %s321, 32, %s324, %s312
        $region36: #{tpu_custom_call.1} parent=23 // pred_fallthru
          _
        // Predicated region
        $region37: #{tpu_custom_call.1} parent=23 // pred_check
          %p327 = pneg %p184
        $region38: #{tpu_custom_call.1} parent=23 // pred_check_branch
          %329 = sbr.rel (%p327) target = $region40
        $region39: #{tpu_custom_call.1} parent=23 // pred_region
          %p330 = scmp.lt.s32.totalorder %s32, 1
          %s331 = scalar_select %p330, %s32, 1
          %p332 = scmp.lt.s32.totalorder %s31, 0
          %s333 = scalar_select %p332, %s31, 0
          %s334 = sadd.s32 %s333, %s331
          %s335 = smul.addr %s334, 2
          %s336 = scalar_lea.vmem %s5, %s335
        $region40: #{tpu_custom_call.1} parent=23 // pred_fallthru
          _
        // Predicated region
        $region41: #{tpu_custom_call.1} parent=23 // pred_check
          %p337 = pneg %p212
        $region42: #{tpu_custom_call.1} parent=23 // pred_check_branch
          %339 = sbr.rel (%p337) target = $region44
        $region43: #{tpu_custom_call.1} parent=23 // pred_region
          %s340 = sand.u32 %s24, 1
          %s341 = scalar_lea.sflag [#allocation9], %s340
          %s342 = sand.u32 %s202, 1
          %s343 = smul.addr %s342, 2
          %s344 = scalar_lea.vmem [#allocation10], %s343
          %s346 = ssub.s32 32, 32
          %347 = vsyncadd %s341, %s346
          %s348 = sadd.s32 %s31, %s32
          %s349 = smul.addr %s348, 32
          %s350 = scalar_lea.hbm %s6, %s349
          %s352 = sshll.u32 %s344, 4
          %s353 = int_to_ptr.vmem [resolvable:$true] %s352
          %355 = dma.hbm_to_vmem [thread:$0]  %s350, 32, %s353, %s341
        $region44: #{tpu_custom_call.1} parent=23 // pred_fallthru
          _
      $region24: #{tpu_custom_call.1} parent=5 // pred_fallthru
        _
      %p356 = scmp.le.s32.totalorder 1, %s24
      %p357 = scmp.lt.s32.totalorder %s24, 3
      %p358 = pnand %p356, %p357
      %p359 = pneg %p358
      // Predicated region
      $region45: #{tpu_custom_call.1} parent=5 // pred_check
        _
      $region46: #{tpu_custom_call.1} parent=5 // pred_check_branch
        %361 = sbr.rel (%p358) target = $region48
      $region47: #{tpu_custom_call.1} parent=5 // pred_region
        %s362 = ssub.s32 %s24, 1
        // Predicated region
        $region49: #{tpu_custom_call.1} parent=47 // pred_check
          %p363 = pneg %p57
        $region50: #{tpu_custom_call.1} parent=47 // pred_check_branch
          %365 = sbr.rel (%p363) target = $region52
        $region51: #{tpu_custom_call.1} parent=47 // pred_region
          %366 = dma.done [#allocation6], 16
        $region52: #{tpu_custom_call.1} parent=47 // pred_fallthru
          _
        %s367 = sand.u32 %s93, 1
        %s368 = scalar_lea.sflag [#allocation4], %s367
        %s369 = sand.u32 %s93, 1
        %s370 = smul.addr %s369, 2
        %s371 = scalar_lea.vmem [#allocation7], %s370
        // Predicated region
        $region53: #{tpu_custom_call.1} parent=47 // pred_check
          %p372 = pneg %p106
        $region54: #{tpu_custom_call.1} parent=47 // pred_check_branch
          %374 = sbr.rel (%p372) target = $region56
        $region55: #{tpu_custom_call.1} parent=47 // pred_region
          %375 = dma.done %s368, 32
        $region56: #{tpu_custom_call.1} parent=47 // pred_fallthru
          _
        %s376 = sand.u32 %s29, 1
        %s377 = scalar_lea.sflag [#allocation9], %s376
        %s378 = sand.u32 %s149, 1
        %s379 = smul.addr %s378, 2
        %s380 = scalar_lea.vmem [#allocation8], %s379
        // Predicated region
        $region57: #{tpu_custom_call.1} parent=47 // pred_check
          %p381 = pneg %p162
        $region58: #{tpu_custom_call.1} parent=47 // pred_check_branch
          %383 = sbr.rel (%p381) target = $region60
        $region59: #{tpu_custom_call.1} parent=47 // pred_region
          %384 = dma.done %s377, 32
        $region60: #{tpu_custom_call.1} parent=47 // pred_fallthru
          _
        %s385 = sand.u32 %s29, 1
        %s386 = scalar_lea.sflag [#allocation9], %s385
        %s387 = sand.u32 %s205, 1
        %s388 = smul.addr %s387, 2
        %s389 = scalar_lea.vmem [#allocation10], %s388
        // Predicated region
        $region61: #{tpu_custom_call.1} parent=47 // pred_check
          %p390 = pneg %p218
        $region62: #{tpu_custom_call.1} parent=47 // pred_check_branch
          %392 = sbr.rel (%p390) target = $region64
        $region63: #{tpu_custom_call.1} parent=47 // pred_region
          %393 = dma.done %s386, 32
        $region64: #{tpu_custom_call.1} parent=47 // pred_fallthru
          _
        %394 = sfence
        %p395 = pneg %p57
        %p396 = pneg %p54
        %p397 = pneg %p78
        %p398 = pneg %p75
        %s399 = sand.u32 %s93, 1
        %s400 = scalar_lea.sflag [#allocation4], %s399
        %s401 = sand.u32 %s93, 1
        %s402 = smul.addr %s401, 2
        %s403 = scalar_lea.vmem [#allocation7], %s402
        %p404 = pneg %p106
        %p405 = pneg %p103
        %p406 = scmp.lt.s32.totalorder %s34, 1
        %s407 = scalar_select %p406, %s34, 1
        %p408 = scmp.lt.s32.totalorder %s33, 0
        %s409 = scalar_select %p408, %s33, 0
        %s410 = sadd.s32 %s409, %s407
        %s411 = smul.addr %s410, 2
        %s412 = scalar_lea.vmem %s3, %s411
        %p413 = pneg %p134
        %p414 = pneg %p131
        %s415 = sand.u32 %s29, 1
        %s416 = scalar_lea.sflag [#allocation9], %s415
        %s417 = sand.u32 %s149, 1
        %s418 = smul.addr %s417, 2
        %s419 = scalar_lea.vmem [#allocation8], %s418
        %p420 = pneg %p162
        %p421 = pneg %p159
        %p422 = scmp.lt.s32.totalorder %s34, 1
        %s423 = scalar_select %p422, %s34, 1
        %p424 = scmp.lt.s32.totalorder %s33, 0
        %s425 = scalar_select %p424, %s33, 0
        %s426 = sadd.s32 %s425, %s423
        %s427 = smul.addr %s426, 2
        %s428 = scalar_lea.vmem %s5, %s427
        %p429 = pneg %p190
        %p430 = pneg %p187
        %s431 = sand.u32 %s29, 1
        %s432 = scalar_lea.sflag [#allocation9], %s431
        %s433 = sand.u32 %s205, 1
        %s434 = smul.addr %s433, 2
        %s435 = scalar_lea.vmem [#allocation10], %s434
        %p436 = pneg %p218
        %p437 = pneg %p215
        %p438 = pneg %p246
        %p439 = pneg %p243
        %s440 = sand.u32 %s233, 1
        %s441 = scalar_lea.sflag [#allocation5], %s440
        %s442 = sand.u32 %s233, 1
        %s443 = smul.addr %s442, 2
        %s444 = scalar_lea.vmem [#allocation11], %s443
        %p445 = scmp.lt.s32.totalorder %s34, 1
        %s446 = scalar_select %p445, %s34, 1
        %p447 = scmp.lt.s32.totalorder %s33, 0
        %s448 = scalar_select %p447, %s33, 0
        %s449 = sadd.s32 %s448, %s446
        %s450 = smul.addr %s449, 2
        %s451 = scalar_lea.vmem %s3, %s450
        %p452 = scmp.lt.s32.totalorder %s34, 1
        %s453 = scalar_select %p452, %s34, 1
        %p454 = scmp.lt.s32.totalorder %s33, 0
        %s455 = scalar_select %p454, %s33, 0
        %s456 = sadd.s32 %s455, %s453
        %s457 = smul.addr %s456, 2
        %s458 = scalar_lea.vmem %s5, %s457
        %s459 = sld [smem:[#allocation2]]
        %v460 = vstv %s459
        %v461 = vld [vmem:[%s371] sm:$0x3]
        %s462 = sld [smem:[#allocation3]]
        %v463 = vstv %s462
        %v464 = vmul.f32 %v461, %v463
        %v465 = vadd.f32 %v460, %v464
        %v466 = vld [vmem:[%s451] sm:$0x3]
        %s467 = sld [smem:[#allocation3 + $0x1]]
        %v468 = vstv %s467
        %v469 = vmul.f32 %v466, %v468
        %v470 = vadd.f32 %v465, %v469
        %v471 = vld [vmem:[%s380] sm:$0x3]
        %s472 = sld [smem:[#allocation3 + $0x2]]
        %v473 = vstv %s472
        %v474 = vmul.f32 %v471, %v473
        %v475 = vadd.f32 %v470, %v474
        %v476 = vld [vmem:[%s458] sm:$0x3]
        %s477 = sld [smem:[#allocation3 + $0x3]]
        %v478 = vstv %s477
        %v479 = vmul.f32 %v476, %v478
        %v480 = vadd.f32 %v475, %v479
        %v481 = vld [vmem:[%s389] sm:$0x3]
        %s482 = sld [smem:[#allocation3 + $0x4]]
        %v483 = vstv %s482
        %v484 = vmul.f32 %v481, %v483
        %v485 = vadd.f32 %v480, %v484
        %486 = vst [vmem:[%s444] sm:$0x3] %v485
        %s487 = sand.u32 %s233, 1
        %s488 = scalar_lea.sflag [#allocation5], %s487
        %s489 = sand.u32 %s233, 1
        %s490 = smul.addr %s489, 2
        %s491 = scalar_lea.vmem [#allocation11], %s490
        // Predicated region
        $region65: #{tpu_custom_call.1} parent=47 // pred_check
          %p492 = pneg %p243
        $region66: #{tpu_custom_call.1} parent=47 // pred_check_branch
          %494 = sbr.rel (%p492) target = $region68
        $region67: #{tpu_custom_call.1} parent=47 // pred_region
          %s496 = ssub.s32 32, 32
          %497 = vsyncadd %s488, %s496
          %s498 = sadd.s32 %s33, %s34
          %s499 = smul.addr %s498, 32
          %s500 = scalar_lea.hbm %s7, %s499
          %s502 = sshll.u32 %s491, 4
          %s503 = int_to_ptr.vmem [resolvable:$true] %s502
          %505 = dma.vmem_to_hbm [thread:$0]  %s503, 32, %s500, %s488
        $region68: #{tpu_custom_call.1} parent=47 // pred_fallthru
          _
      $region48: #{tpu_custom_call.1} parent=5 // pred_fallthru
        _
      %p506 = scmp.le.s32.totalorder 2, %s24
      // Predicated region
      $region69: #{tpu_custom_call.1} parent=5 // pred_check
        %p507 = pneg %p506
      $region70: #{tpu_custom_call.1} parent=5 // pred_check_branch
        %509 = sbr.rel (%p507) target = $region72
      $region71: #{tpu_custom_call.1} parent=5 // pred_region
        %s510 = ssub.s32 %s24, 2
        // Predicated region
        $region73: #{tpu_custom_call.1} parent=71 // pred_check
          %p511 = pneg %p249
        $region74: #{tpu_custom_call.1} parent=71 // pred_check_branch
          %513 = sbr.rel (%p511) target = $region76
        $region75: #{tpu_custom_call.1} parent=71 // pred_region
          %s514 = sand.u32 %s234, 1
          %s515 = scalar_lea.sflag [#allocation5], %s514
          %s516 = sand.u32 %s234, 1
          %s517 = smul.addr %s516, 2
          %s518 = scalar_lea.vmem [#allocation11], %s517
          %519 = dma.done %s515, 32
        $region76: #{tpu_custom_call.1} parent=71 // pred_fallthru
          _
      $region72: #{tpu_custom_call.1} parent=5 // pred_fallthru
        _
    $region6: #{tpu_custom_call.1} parent=1 // loop_footer
      %s28 = sadd.s32 1, %s24
    $region7: #{tpu_custom_call.1} parent=1 // loop_footer_branch
      %23 = sbr.rel target = $region3
    $region8: #{tpu_custom_call.1} parent=1 // loop_exit
      _
    %520 = vsyncpa [#allocation4], 1
    %s521 = scalar_lea.sflag [#allocation4], 1
    %522 = vsyncpa %s521, 1
    %523 = vsyncpa [#allocation9], 1
    %s524 = scalar_lea.sflag [#allocation9], 1
    %525 = vsyncpa %s524, 1
    %526 = vsyncpa [#allocation5], 1
    %s527 = scalar_lea.sflag [#allocation5], 1
    %528 = vsyncpa %s527, 1
    %529 = vsyncpa [#allocation6], 1
    %s530 = scalar_lea.sflag [#allocation6], 1
    %531 = vsyncpa %s530, 1

</llo_original>
